<compile_context>
chip_gen: v6e
topology: v6e:2x2x1
jax: 0.10.0
libtpu: 0.0.40
codegen_flags: <defaults>
</compile_context>

<pallas_src>
import functools
import math

import jax
import jax.numpy as jnp
from jax.experimental import pallas as pl
from jax.experimental.pallas import tpu as pltpu

_LANES = 128


def _drop_path_kernel(keep_ref, x_ref, o_ref, *, inv_keep):
    # keep_ref: (grid_b * TB,) int32 in SMEM (scalar prefetch).
    # x_ref / o_ref blocks: (TB, TR, L) in VMEM.
    tb = x_ref.shape[0]
    base = pl.program_id(0) * tb

    def body(t, carry):
        # 0.0 or 1/keep_prob, computed in f32 from the int32 keep bit.
        s = keep_ref[base + t].astype(jnp.float32) * inv_keep
        o_ref[t] = (x_ref[t] * s).astype(o_ref.dtype)
        return carry

    jax.lax.fori_loop(0, tb, body, 0, unroll=(tb if tb <= 8 else 8))


def _tuning():
    """Generation-aware (block_byte_target, min_grid_steps)."""
    try:
        kind = jax.devices()[0].device_kind.lower()
    except Exception:
        return (2 << 20), 1
    if ("v7" in kind) or ("7x" in kind):
        return (4 << 20), 8        # 2 TensorCores: keep both fed.
    if "v6" in kind:
        return (4 << 20), 1
    return (2 << 20), 1            # v5e & older: stay inside 16 MiB scoped VMEM.


def _choose_tiles(batch, rows, lanes, dtype_bytes, target_bytes, min_steps):
    """Pick (TB, TR) so one (TB, TR, lanes) block is near the byte target."""
    row_bytes = lanes * dtype_bytes
    max_rows = max(8, (target_bytes // max(row_bytes, 1)) // 8 * 8)
    if rows <= max_rows:
        tr = rows                                   # full feature rows (ok: == full dim)
        tb = max(1, min(batch, target_bytes // max(1, tr * row_bytes)))
    else:
        tr = max_rows                               # multiple of 8 sublanes
        tb = 1
    # Ensure enough grid steps for megacore (v7x); no-op elsewhere.
    while pl.cdiv(batch, tb) * pl.cdiv(rows, tr) < min_steps:
        if tb > 1:
            tb = (tb + 1) // 2
        elif tr > 8:
            tr = max(8, (((tr + 1) // 2) + 7) // 8 * 8)
        else:
            break
    return tb, tr


def drop_path(x, drop_prob=0.0, training=False, *, key=None, seed=0, donate=False):
    """Pallas implementation of timm-style drop_path (stochastic depth)."""
    if drop_prob == 0.0 or not training:
        return x

    keep_prob = 1.0 - float(drop_prob)
    B = x.shape[0]
    feat = int(math.prod(x.shape[1:]))
    dtype_bytes = jnp.dtype(x.dtype).itemsize
    target_bytes, min_steps = _tuning()

    # Lane-dense view without any padding / slicing HBM passes.
    if feat % _LANES == 0:
        rows, lanes = feat // _LANES, _LANES
    else:
        rows, lanes = 1, feat       # full-feature rows; stores masked but correct
    x3 = x.reshape(B, rows, lanes)

    TB, TR = _choose_tiles(B, rows, lanes, dtype_bytes, target_bytes, min_steps)
    grid_b = pl.cdiv(B, TB)
    grid_r = pl.cdiv(rows, TR)

    # Per-sample keep bit (int32) -- precomputed with jax.random, delivered to
    # SMEM via scalar prefetch.  Padded to the grid extent so ragged batch
    # blocks never read out of range.
    if key is None:
        key = jax.random.PRNGKey(seed)
    u = jax.random.uniform(key, (B,), dtype=jnp.float32)
    keep = jnp.floor(jnp.float32(keep_prob) + u).astype(jnp.int32)
    pad_b = grid_b * TB - B
    if pad_b:
        keep = jnp.pad(keep, (0, pad_b))

    block_bytes = TB * TR * lanes * dtype_bytes
    vmem_limit = int(min(max(4 * block_bytes + (2 << 20), 16 << 20), 32 << 20))

    kernel = functools.partial(_drop_path_kernel, inv_keep=1.0 / keep_prob)

    # NOTE: operand indices for input_output_aliases count the scalar-prefetch
    # operand too (keep is operand 0, x3 is operand 1).
    io_aliases = {1: 0} if donate else {}

    out = pl.pallas_call(
        kernel,
        out_shape=jax.ShapeDtypeStruct((B, rows, lanes), x.dtype),
        grid_spec=pltpu.PrefetchScalarGridSpec(
            num_scalar_prefetch=1,
            grid=(grid_b, grid_r),
            in_specs=[pl.BlockSpec((TB, TR, lanes), lambda ib, ir, keep: (ib, ir, 0))],
            out_specs=pl.BlockSpec((TB, TR, lanes), lambda ib, ir, keep: (ib, ir, 0)),
        ),
        compiler_params=pltpu.CompilerParams(
            dimension_semantics=("parallel", "parallel"),
            vmem_limit_bytes=vmem_limit,
        ),
        input_output_aliases=io_aliases,
    )(keep, x3)

    return out.reshape(x.shape)


class DropPath:
    """Mirror of the PyTorch nn.Module (no learnable parameters)."""

    def __init__(self, drop_prob=None):
        self.drop_prob = 0.0 if drop_prob is None else float(drop_prob)
        self.training = True

    def __call__(self, x, seed=0, key=None):
        return drop_path(x, self.drop_prob, self.training, seed=seed, key=key)


if __name__ == "__main__":
    root = jax.random.PRNGKey(0)
    k1, k2 = jax.random.split(root)
    ok = True

    # 1) 128-aligned feature size (4*16*16 = 1024), f32, NCHW.
    x = jax.random.normal(k1, (2, 4, 16, 16), dtype=jnp.float32)
    module = DropPath(drop_prob=0.2)
    module.training = True
    y = jax.block_until_ready(module(x, seed=42))
    keep_prob = 1.0 - module.drop_prob
    for b in range(x.shape[0]):
        yb = y[b]
        kept = bool(jnp.allclose(yb, x[b] / keep_prob, atol=1e-5))
        dropped = bool(jnp.allclose(yb, jnp.zeros_like(yb), atol=1e-5))
        ok = ok and (kept or dropped)

    # 2) Non-128-aligned feature size (5*7*9 = 315) exercises the (B,1,feat) path.
    x2 = jax.random.normal(k2, (3, 5, 7, 9), dtype=jnp.float32)
    y2 = jax.block_until_ready(drop_path(x2, 0.3, True, seed=7))
    kp2 = 1.0 - 0.3
    for b in range(x2.shape[0]):
        yb = y2[b]
        kept = bool(jnp.allclose(yb, x2[b] / kp2, atol=1e-5))
        dropped = bool(jnp.allclose(yb, jnp.zeros_like(yb), atol=1e-5))
        ok = ok and (kept or dropped)

    # 3) Identity path (eval mode) must return x unchanged.
    module.training = False
    y_eval = jax.block_until_ready(module(x))
    ok = ok and bool(jnp.allclose(y_eval, x))

    print("KERNEL_OK" if ok else "KERNEL_MISMATCH")
</pallas_src>

<mosaic_0001>
module attributes {stable_mosaic.version = 11 : i64} {
  func.func @_drop_path_kernel(%arg0: i32, %arg1: i32, %arg2: memref<2xi32, #tpu.memory_space<smem>>, %arg3: memref<2x8x128xf32, #tpu.memory_space<vmem>>, %arg4: memref<2x8x128xf32, #tpu.memory_space<vmem>>) attributes {dimension_semantics = [#tpu.dimension_semantics<parallel>, #tpu.dimension_semantics<parallel>], iteration_bounds = array<i64: 1, 1>, scalar_prefetch = 1 : i64, scratch_operands = 0 : i64, tpu.core_type = #tpu.core_type<tc>, window_params = [{transform_indices = @transform_0, window_bounds = array<i64: 2, 8, 128>}, {transform_indices = @transform_1, window_bounds = array<i64: 2, 8, 128>}]} {
    %c2_i32 = arith.constant 2 : i32
    %0 = arith.muli %arg0, %c2_i32 : i32
    %c0_i32 = arith.constant 0 : i32
    %1 = arith.addi %0, %c0_i32 : i32
    %2 = arith.index_cast %1 : i32 to index
    %3 = memref.load %arg2[%2] : memref<2xi32, #tpu.memory_space<smem>>
    %4 = arith.sitofp %3 : i32 to f32
    %cst = arith.constant 1.250000e+00 : f32
    %5 = arith.mulf %4, %cst : f32
    %6 = arith.index_cast %c0_i32 : i32 to index
    %c0 = arith.constant 0 : index
    %c0_0 = arith.constant 0 : index
    %7 = vector.load %arg3[%6, %c0, %c0_0] : memref<2x8x128xf32, #tpu.memory_space<vmem>>, vector<1x8x128xf32>
    %8 = vector.shape_cast %7 : vector<1x8x128xf32> to vector<8x128xf32>
    %9 = vector.broadcast %5 : f32 to vector<8x128xf32>
    %10 = arith.mulf %8, %9 : vector<8x128xf32>
    %11 = arith.index_cast %c0_i32 : i32 to index
    %c0_1 = arith.constant 0 : index
    %c0_2 = arith.constant 0 : index
    %12 = vector.load %arg4[%11, %c0_1, %c0_2] : memref<2x8x128xf32, #tpu.memory_space<vmem>>, vector<1x8x128xf32>
    %13 = vector.shape_cast %12 : vector<1x8x128xf32> to vector<8x128xf32>
    %14 = vector.shape_cast %10 : vector<8x128xf32> to vector<1x8x128xf32>
    tpu.vector_store %arg4[%11, %c0_1, %c0_2], %14 {strides = array<i32>} : memref<2x8x128xf32, #tpu.memory_space<vmem>>, vector<1x8x128xf32>,
    %c1_i32 = arith.constant 1 : i32
    %15 = arith.addi %0, %c1_i32 : i32
    %16 = arith.index_cast %15 : i32 to index
    %17 = memref.load %arg2[%16] : memref<2xi32, #tpu.memory_space<smem>>
    %18 = arith.sitofp %17 : i32 to f32
    %cst_3 = arith.constant 1.250000e+00 : f32
    %19 = arith.mulf %18, %cst_3 : f32
    %20 = arith.index_cast %c1_i32 : i32 to index
    %c0_4 = arith.constant 0 : index
    %c0_5 = arith.constant 0 : index
    %21 = vector.load %arg3[%20, %c0_4, %c0_5] : memref<2x8x128xf32, #tpu.memory_space<vmem>>, vector<1x8x128xf32>
    %22 = vector.shape_cast %21 : vector<1x8x128xf32> to vector<8x128xf32>
    %23 = vector.broadcast %19 : f32 to vector<8x128xf32>
    %24 = arith.mulf %22, %23 : vector<8x128xf32>
    %25 = arith.index_cast %c1_i32 : i32 to index
    %c0_6 = arith.constant 0 : index
    %c0_7 = arith.constant 0 : index
    %26 = vector.load %arg4[%25, %c0_6, %c0_7] : memref<2x8x128xf32, #tpu.memory_space<vmem>>, vector<1x8x128xf32>
    %27 = vector.shape_cast %26 : vector<1x8x128xf32> to vector<8x128xf32>
    %28 = vector.shape_cast %24 : vector<8x128xf32> to vector<1x8x128xf32>
    tpu.vector_store %arg4[%25, %c0_6, %c0_7], %28 {strides = array<i32>} : memref<2x8x128xf32, #tpu.memory_space<vmem>>, vector<1x8x128xf32>,
    %c2_i32_8 = arith.constant 2 : i32
    return
  }
  func.func @transform_0(%arg0: i32, %arg1: i32, %arg2: memref<2xi32, #tpu.memory_space<smem>>) -> (i32, i32, i32) {
    %c0_i32 = arith.constant 0 : i32
    %c0_i32_0 = arith.constant 0 : i32
    return %arg0, %arg1, %c0_i32 : i32, i32, i32
  }
  func.func @transform_1(%arg0: i32, %arg1: i32, %arg2: memref<2xi32, #tpu.memory_space<smem>>) -> (i32, i32, i32) {
    %c0_i32 = arith.constant 0 : i32
    %c0_i32_0 = arith.constant 0 : i32
    return %arg0, %arg1, %c0_i32 : i32, i32, i32
  }
}

</mosaic_0001>

<llo_original>
// kernel: tpu_custom_call.1
$region0: #{tpu_custom_call.1}
  #allocation0 [shape = 'u32[]', space=smem, size = 0x4, offset = 0x4, fixed_abs, tag = 'smem constant byte address 0x4 - core index']
  #allocation1 [shape = 'u32[144,128]{1,0:T(1,128)}', space=vmem, size = 0x12000, scoped, tag = 'internal scratch']
  #allocation2 [shape = 's32[1]{0}', space=sflag, size = 0x4, scoped, tag = 'scoped memory for tpu_custom_call.1']
  #allocation3 [shape = 'u8[512]{0}', space=smem, size = 0x200, scoped, tag = 'prefetched SMEM operand 0']
  %s0 = inlined_call_operand.hbm [shape: s32[2], index: 0, kind: input, shape index: {}]
  %s1 = inlined_call_operand.hbm [shape: f32[2,8,128], index: 1, kind: input, shape index: {}]
  %s2 = inlined_call_operand.hbm [shape: f32[2,8,128], index: 2, kind: output, shape index: {}]
  %s3 = sld [smem:[#allocation0]]
  $region18: #{tpu_custom_call.1} parent=0
    _
  %s5 = ssub.s32 1, %s3
  %s6 = scalar_select 0, %s5, %s3
  %8 = dma.hbm_to_smem %s0, 16, [#allocation3], [#allocation2]
  %9 = dma.done [#allocation2], 16
  %10 = sfence
  $region1: #{tpu_custom_call.1} parent=0
    #allocation4 [shape = 'u8[8192]{0}', space=vmem, size = 0x2000, scoped, tag = 'input window, operand 1, single buffered']
    #allocation5 [shape = 's32[1]{0}', space=sflag, size = 0x4, scoped, tag = 'scoped memory for tpu_custom_call.1']
    #allocation6 [shape = 's32[1]{0}', space=sflag, size = 0x4, scoped, tag = 'scoped memory for tpu_custom_call.1']
    #allocation7 [shape = 'u8[8192]{0}', space=vmem, size = 0x2000, scoped, tag = 'output window, operand 0, single buffered']
    %11 = vsyncpa [#allocation5], 0
    %12 = vsyncpa [#allocation6], 0
    // Predicated region
    $region2: #{tpu_custom_call.1} parent=1 // pred_check
      _
    $region3: #{tpu_custom_call.1} parent=1 // pred_check_branch
      %14 = sbr.rel (0) target = $region5
    $region4: #{tpu_custom_call.1} parent=1 // pred_region
      %s16 = ssub.s32 256, 256
      %17 = vsyncadd [#allocation5], %s16
      %s18 = sshll.u32 [#allocation4], 4
      %s19 = int_to_ptr.vmem [resolvable:$true] %s18
      %24 = dma.hbm_to_vmem [thread:$0]  %s1, 256, %s19, [#allocation5], 128, 128, 8
    $region5: #{tpu_custom_call.1} parent=1 // pred_fallthru
      _
    // Predicated region
    $region6: #{tpu_custom_call.1} parent=1 // pred_check
      _
    $region7: #{tpu_custom_call.1} parent=1 // pred_check_branch
      %26 = sbr.rel (0) target = $region9
    $region8: #{tpu_custom_call.1} parent=1 // pred_region
      %27 = dma.done [#allocation5], 256
    $region9: #{tpu_custom_call.1} parent=1 // pred_fallthru
      _
    %s28 = smul.u32 0, 2
    %s29 = sld [smem:[#allocation3 + %s28]]
    %s30 = scvt.s32.f32 %s29
    %s31 = smul.f32 %s30, 1.25
    %v32 = vld [vmem:[#allocation4] sm:$0xff]
    %v33 = vstv %s31
    %v34 = vmul.f32 %v32, %v33
    %35 = vst [vmem:[#allocation7] sm:$0xff] %v34
    %s36 = sadd.s32 %s28, 1
    %s37 = sld [smem:[#allocation3 + %s36]]
    %s38 = scvt.s32.f32 %s37
    %s39 = smul.f32 %s38, 1.25
    %s40 = scalar_lea.vmem [#allocation4], 8
    %v41 = vld [vmem:[%s40] sm:$0xff]
    %v42 = vstv %s39
    %v43 = vmul.f32 %v41, %v42
    %s44 = scalar_lea.vmem [#allocation7], 8
    %45 = vst [vmem:[%s44] sm:$0xff] %v43
    // Predicated region
    $region10: #{tpu_custom_call.1} parent=1 // pred_check
      _
    $region11: #{tpu_custom_call.1} parent=1 // pred_check_branch
      %47 = sbr.rel (0) target = $region13
    $region12: #{tpu_custom_call.1} parent=1 // pred_region
      %s49 = ssub.s32 256, 256
      %50 = vsyncadd [#allocation6], %s49
      %s51 = sshll.u32 [#allocation7], 4
      %s52 = int_to_ptr.vmem [resolvable:$true] %s51
      %57 = dma.vmem_to_hbm [thread:$0]  %s52, 256, %s2, [#allocation6], 128, 128, 8
    $region13: #{tpu_custom_call.1} parent=1 // pred_fallthru
      _
    // Predicated region
    $region14: #{tpu_custom_call.1} parent=1 // pred_check
      _
    $region15: #{tpu_custom_call.1} parent=1 // pred_check_branch
      %59 = sbr.rel (0) target = $region17
    $region16: #{tpu_custom_call.1} parent=1 // pred_region
      %60 = dma.done [#allocation6], 256
    $region17: #{tpu_custom_call.1} parent=1 // pred_fallthru
      _
    %61 = vsyncpa [#allocation5], 1
    %62 = vsyncpa [#allocation6], 1

</llo_original>
